<compile_context>
chip_gen: v7x
topology: tpu7x:2x2x1
jax: 0.10.0
libtpu: 0.0.40
codegen_flags: <defaults>
</compile_context>

<pallas_src>
import math

import jax
import jax.numpy as jnp
from jax import lax
from jax.experimental import pallas as pl
from jax.experimental.pallas import tpu as pltpu


def _mlp_kernel(x_ref, w_ref, o_ref):
    # x_ref: (TB, D) streamed tile of bag embeddings
    # w_ref: (D, 1)  resident column weight
    # o_ref: (TB, 1) f32 output tile
    o_ref[...] = lax.dot_general(
        x_ref[...],
        w_ref[...],
        dimension_numbers=(((1,), (0,)), ((), ())),  # (TB,D) @ (D,1)
        preferred_element_type=jnp.float32,
    )


def _pick_block_rows(n_rows, n_feats, itemsize, *,
                     bytes_per_buffer=8 * 1024 * 1024,
                     single_tile_max_bytes=4 * 1024 * 1024):
    """Rows per tile.

    Small problems run as one full-array block (no alignment constraints).
    Larger problems are split into >= 2 tiles (so v7x's 2 TensorCores both get
    work) whose per-buffer footprint stays under `bytes_per_buffer`, rounded
    down to a multiple of 128 rows (8 rows for very wide feature dims) so
    block shapes respect the (8, 128) tiling rules.
    """
    row_bytes = max(1, n_feats * itemsize)
    total_bytes = n_rows * row_bytes
    if total_bytes <= min(single_tile_max_bytes, bytes_per_buffer):
        return n_rows  # single tile; block dims equal the full array dims
    rows_budget = max(1, bytes_per_buffer // row_bytes)
    rows_half = max(1, n_rows // 2)  # guarantee >= 2 grid steps
    tb = min(rows_budget, rows_half)
    if tb >= 128:
        tb = (tb // 128) * 128
    else:
        tb = max(8, (tb // 8) * 8)
    return min(tb, n_rows)


def _vmem_limit_bytes(tb, n_feats, in_itemsize):
    x_bufs = 2 * tb * n_feats * in_itemsize   # double-buffered streamed tiles
    w_bufs = 2 * n_feats * in_itemsize        # resident weight (conservative x2)
    o_bufs = 2 * tb * 4                       # f32 output tiles
    need = int(1.25 * (x_bufs + w_bufs + o_bufs)) + (4 << 20)
    # Floor covers compiler-internal scratch; ceiling stays well under v7x's
    # 64 MiB physical VMEM.  With the default 8 MiB buffer budget this lands
    # around ~24 MiB, which also clears v5e's 16 MiB scoped default.
    return max(8 << 20, min(need, 56 << 20))


def mlp_forward(bag_emb: jax.Array, weight: jax.Array, *,
                bytes_per_buffer: int = 8 * 1024 * 1024,
                single_tile_max_bytes: int = 4 * 1024 * 1024) -> jax.Array:
    """bag_emb: (B, D); weight: (1, D) (nn.Linear layout).  Returns (B, 1) f32."""
    B, D = bag_emb.shape
    assert weight.shape == (1, D), "weight must be the nn.Linear (1, in_feats) matrix"
    # Transpose the tiny weight once on the host -> (D, 1) column, so the
    # kernel never transposes the big streamed tile.
    w_col = weight.astype(bag_emb.dtype).T

    itemsize = jnp.dtype(bag_emb.dtype).itemsize
    tb = _pick_block_rows(B, D, itemsize,
                          bytes_per_buffer=bytes_per_buffer,
                          single_tile_max_bytes=single_tile_max_bytes)
    grid = (pl.cdiv(B, tb),)

    cost = pl.CostEstimate(
        flops=2 * B * D,
        transcendentals=0,
        bytes_accessed=B * D * itemsize + D * itemsize + B * 4,
    )

    out = pl.pallas_call(
        _mlp_kernel,
        out_shape=jax.ShapeDtypeStruct((B, 1), jnp.float32),
        grid_spec=pltpu.PrefetchScalarGridSpec(
            num_scalar_prefetch=0,
            grid=grid,
            in_specs=[
                pl.BlockSpec((tb, D), lambda i: (i, 0)),  # streamed row tiles
                pl.BlockSpec((D, 1), lambda i: (0, 0)),   # resident weight column
            ],
            out_specs=pl.BlockSpec((tb, 1), lambda i: (i, 0)),
        ),
        compiler_params=pltpu.CompilerParams(
            dimension_semantics=("parallel",),  # disjoint row tiles -> 2 TCs on v7x
            vmem_limit_bytes=_vmem_limit_bytes(tb, D, itemsize),
        ),
        cost_estimate=cost,
    )(bag_emb, w_col)
    return out


def mlp_forward_auto(bag_emb: jax.Array, weight: jax.Array, *,
                     min_rows_for_kernel: int = 256, **kwargs) -> jax.Array:
    """Tiny GEMVs are dominated by pallas_call launch overhead; let XLA fuse
    them and only dispatch to the Pallas kernel above a batch-size threshold."""
    if bag_emb.shape[0] < min_rows_for_kernel:
        return jnp.dot(bag_emb, weight.astype(bag_emb.dtype).T,
                       preferred_element_type=jnp.float32)
    return mlp_forward(bag_emb, weight, **kwargs)


def xavier_uniform_weight(key, in_feats: int, out_feats: int = 1) -> jax.Array:
    # matches torch.nn.init.xavier_uniform_ for a (out_feats, in_feats) weight
    bound = math.sqrt(6.0 / (in_feats + out_feats))
    return jax.random.uniform(
        key, (out_feats, in_feats), minval=-bound, maxval=bound, dtype=jnp.float32
    )


if __name__ == "__main__":
    # TODO(synk): training-time dropout (nn.Dropout) omitted; dropout=0.0 -> identity.
    key = jax.random.PRNGKey(0)
    k_x, k_w, k_x2, k_w2 = jax.random.split(key, 4)

    # 1) small single-tile case (shapes implied by the module)
    B, D = 8, 32
    bag_emb = jax.random.normal(k_x, (B, D), dtype=jnp.float32)
    weight = xavier_uniform_weight(k_w, in_feats=D, out_feats=1)  # (1, D)
    out = jax.block_until_ready(mlp_forward(bag_emb, weight))
    ref = bag_emb @ weight.T
    assert out.shape == (B, 1)
    assert jnp.allclose(out, ref, atol=1e-5, rtol=1e-5)

    # dispatch helper (tiny batch -> plain XLA dot)
    out_auto = jax.block_until_ready(mlp_forward_auto(bag_emb, weight))
    assert jnp.allclose(out_auto, ref, atol=1e-5, rtol=1e-5)

    # 2) multi-tile case with a partial last block (B % tb != 0, no host pad),
    #    forced via a tiny buffer budget so the cdiv-grid / clamped-DMA path
    #    is exercised.
    B2, D2 = 300, 64
    bag_emb2 = jax.random.normal(k_x2, (B2, D2), dtype=jnp.float32)
    weight2 = xavier_uniform_weight(k_w2, in_feats=D2, out_feats=1)
    out2 = jax.block_until_ready(
        mlp_forward(bag_emb2, weight2,
                    bytes_per_buffer=64 * 1024, single_tile_max_bytes=0))
    ref2 = bag_emb2 @ weight2.T
    assert out2.shape == (B2, 1)
    assert jnp.allclose(out2, ref2, atol=1e-4, rtol=1e-4)

    # 3) bf16 streaming inputs (halved HBM read traffic), f32 accumulation and
    #    f32 output from the kernel.
    out3 = jax.block_until_ready(
        mlp_forward(bag_emb2.astype(jnp.bfloat16),
                    weight2.astype(jnp.bfloat16),
                    bytes_per_buffer=64 * 1024, single_tile_max_bytes=0))
    assert out3.shape == (B2, 1) and out3.dtype == jnp.float32
    assert jnp.allclose(out3, ref2, atol=5e-2, rtol=5e-2)

    print("KERNEL_OK")
</pallas_src>

<mosaic_0001>
module attributes {stable_mosaic.version = 11 : i64} {
  func.func @_mlp_kernel(%arg0: i32, %arg1: memref<8x32xf32, #tpu.memory_space<vmem>>, %arg2: memref<32x1xf32, #tpu.memory_space<vmem>>, %arg3: memref<8x1xf32, #tpu.memory_space<vmem>>) attributes {dimension_semantics = [#tpu.dimension_semantics<parallel>], iteration_bounds = array<i64: 1>, scalar_prefetch = 0 : i64, scratch_operands = 0 : i64, tpu.core_type = #tpu.core_type<tc>, window_params = [{transform_indices = @transform_0, window_bounds = array<i64: 8, 32>}, {pipeline_mode = #tpu.pipeline_mode<synchronous>, transform_indices = @transform_1, window_bounds = array<i64: 32, 1>}, {transform_indices = @transform_2, window_bounds = array<i64: 8, 1>}]} {
    %c0 = arith.constant 0 : index
    %c0_0 = arith.constant 0 : index
    %0 = vector.load %arg1[%c0, %c0_0] : memref<8x32xf32, #tpu.memory_space<vmem>>, vector<8x32xf32>
    %c0_1 = arith.constant 0 : index
    %c0_2 = arith.constant 0 : index
    %1 = vector.load %arg2[%c0_1, %c0_2] : memref<32x1xf32, #tpu.memory_space<vmem>>, vector<32x1xf32>
    %cst = arith.constant dense<0.000000e+00> : vector<8x1xf32>
    %2 = tpu.matmul %0, %1, %cst {dimension_numbers = #tpu.dot_dimension_numbers<[1], [0], [0], [1], [0, 0, 1, 1], [], []>} : vector<8x32xf32>, vector<32x1xf32>, vector<8x1xf32> -> vector<8x1xf32>
    %c0_3 = arith.constant 0 : index
    %c0_4 = arith.constant 0 : index
    %3 = vector.load %arg3[%c0_3, %c0_4] : memref<8x1xf32, #tpu.memory_space<vmem>>, vector<8x1xf32>
    tpu.vector_store %arg3[%c0_3, %c0_4], %2 {strides = array<i32>} : memref<8x1xf32, #tpu.memory_space<vmem>>, vector<8x1xf32>,
    return
  }
  func.func @transform_0(%arg0: i32) -> (i32, i32) {
    %c0_i32 = arith.constant 0 : i32
    %c0_i32_0 = arith.constant 0 : i32
    return %arg0, %c0_i32 : i32, i32
  }
  func.func @transform_1(%arg0: i32) -> (i32, i32) {
    %c0_i32 = arith.constant 0 : i32
    %c0_i32_0 = arith.constant 0 : i32
    %c0_i32_1 = arith.constant 0 : i32
    return %c0_i32, %c0_i32_0 : i32, i32
  }
  func.func @transform_2(%arg0: i32) -> (i32, i32) {
    %c0_i32 = arith.constant 0 : i32
    %c0_i32_0 = arith.constant 0 : i32
    return %arg0, %c0_i32 : i32, i32
  }
}

</mosaic_0001>

<llo_original>
// kernel: tpu_custom_call.1
$region0: #{tpu_custom_call.1}
  #allocation0 [shape = 'u32[]', space=smem, size = 0x4, offset = 0x4, fixed_abs, tag = 'smem constant byte address 0x4 - core index']
  #allocation1 [shape = 'u32[144,128]{1,0:T(1,128)}', space=vmem, size = 0x12000, scoped, tag = 'internal scratch']
  %s0 = inlined_call_operand.vmem [shape: f32[8,32], index: 0, kind: input, shape index: {}]
  %s1 = inlined_call_operand.vmem [shape: f32[32,1], index: 1, kind: input, shape index: {}]
  %s2 = inlined_call_operand.vmem [shape: f32[8,1], index: 2, kind: output, shape index: {}]
  %s3 = sld [smem:[#allocation0]]
  $region18: #{tpu_custom_call.1} parent=0
    _
  %s5 = ssub.s32 1, %s3
  %s6 = scalar_select 0, %s5, %s3
  // Predicated region
  $region2: #{tpu_custom_call.1} parent=0 // pred_check
    _
  $region3: #{tpu_custom_call.1} parent=0 // pred_check_branch
    %8 = sbr.rel (0) target = $region5
  $region4: #{tpu_custom_call.1} parent=0 // pred_region
    _
  $region5: #{tpu_custom_call.1} parent=0 // pred_fallthru
    _
  // Predicated region
  $region6: #{tpu_custom_call.1} parent=0 // pred_check
    _
  $region7: #{tpu_custom_call.1} parent=0 // pred_check_branch
    %10 = sbr.rel (0) target = $region9
  $region8: #{tpu_custom_call.1} parent=0 // pred_region
    _
  $region9: #{tpu_custom_call.1} parent=0 // pred_fallthru
    _
  %v11 = vld [vmem:[%s0] sm:$0xff]
  %v12 = vld [vmem:[%s1] sm:$0xff]
  %v13 = vld [vmem:[%s1 + $0x8] sm:$0xff]
  %v14 = vld [vmem:[%s1 + $0x10] sm:$0xff]
  %v15 = vld [vmem:[%s1 + $0x18] sm:$0xff]
  %vm16 = vcmask 261120
  %v18 = vsel %vm16, %v11, 0
  %20 = vmatprep.subr.mxu0 0.0
  %21 = vmatpush1.msra.mxu0 %v12
  %22 = vmatprep.subr.mxu0 0.0
  %23 = vmatpush1.msra.mxu0 %v13
  %24 = vmatprep.subr.mxu0 0.0
  %25 = vmatpush1.msra.mxu0 %v14
  %26 = vmatprep.subr.mxu0 0.0
  %27 = vmatpush1.msra.mxu0 %v15
  %28 = vmatprep.subr.mxu0 0.0
  %29 = vmatpush1.msra.mxu0 0.0
  %30 = vmatprep.subr.mxu0 0.0
  %31 = vmatpush1.msra.mxu0 0.0
  %32 = vmatprep.subr.mxu0 0.0
  %33 = vmatpush1.msra.mxu0 0.0
  %34 = vmatprep.subr.mxu0 0.0
  %35 = vmatpush1.msra.mxu0 0.0
  %36 = vmatprep.subr.mxu0 0.0
  %37 = vmatpush1.msra.mxu0 0.0
  %38 = vmatprep.subr.mxu0 0.0
  %39 = vmatpush1.msra.mxu0 0.0
  %40 = vmatprep.subr.mxu0 0.0
  %41 = vmatpush1.msra.mxu0 0.0
  %42 = vmatprep.subr.mxu0 0.0
  %43 = vmatpush1.msra.mxu0 0.0
  %44 = vmatprep.subr.mxu0 0.0
  %45 = vmatpush1.msra.mxu0 0.0
  %46 = vmatprep.subr.mxu0 0.0
  %47 = vmatpush1.msra.mxu0 0.0
  %48 = vmatprep.subr.mxu0 0.0
  %49 = vmatpush1.msra.mxu0 0.0
  %50 = vmatprep.subr.mxu0 0.0
  %51 = vmatpush1.msra.mxu0 0.0
  %52 = vmatprep.subr.mxu0 0.0
  %53 = vmatpush1.msra.mxu0 0.0
  %54 = vmatprep.subr.mxu0 0.0
  %55 = vmatpush1.msra.mxu0 0.0
  %56 = vmatprep.subr.mxu0 0.0
  %57 = vmatpush1.msra.mxu0 0.0
  %58 = vmatprep.subr.mxu0 0.0
  %59 = vmatpush1.msra.mxu0 0.0
  %60 = vmatprep.subr.mxu0 0.0
  %61 = vmatpush1.msra.mxu0 0.0
  %62 = vmatprep.subr.mxu0 0.0
  %63 = vmatpush1.msra.mxu0 0.0
  %64 = vmatprep.subr.mxu0 0.0
  %65 = vmatpush1.msra.mxu0 0.0
  %66 = vmatprep.subr.mxu0 0.0
  %67 = vmatpush1.msra.mxu0 0.0
  %68 = vmatprep.subr.mxu0 0.0
  %69 = vmatpush1.msra.mxu0 0.0
  %70 = vmatprep.subr.mxu0 0.0
  %71 = vmatpush1.msra.mxu0 0.0
  %72 = vmatprep.subr.mxu0 0.0
  %73 = vmatpush1.msra.mxu0 0.0
  %74 = vmatprep.subr.mxu0 0.0
  %75 = vmatpush1.msra.mxu0 0.0
  %76 = vmatprep.subr.mxu0 0.0
  %77 = vmatpush1.msra.mxu0 0.0
  %78 = vmatprep.subr.mxu0 0.0
  %79 = vmatpush1.msra.mxu0 0.0
  %80 = vmatprep.subr.mxu0 0.0
  %81 = vmatpush1.msra.mxu0 0.0
  %82 = vmatprep.subr.mxu0 0.0
  %83 = vmatpush1.msra.mxu0 0.0
  %84 = vmatprep.mubr.f32.mxu0 0.0
  %85 = vmatmul.mubr.f32.gmra.mrb[0].mxu0 %v18
  %v86 = vpop.f32.mrb[0].mxu0
  %v87 = vadd.f32 0.0, %v86
  %v88 = vpop.f32.mrb[0].mxu0
  %89 = vdwg.mxu0
  %vm90 = vcmask 7168
  %91 = vst.msk [vmem:[%s2] sm:$0xff] %vm90, %v87
  // Predicated region
  $region10: #{tpu_custom_call.1} parent=0 // pred_check
    _
  $region11: #{tpu_custom_call.1} parent=0 // pred_check_branch
    %93 = sbr.rel (0) target = $region13
  $region12: #{tpu_custom_call.1} parent=0 // pred_region
    _
  $region13: #{tpu_custom_call.1} parent=0 // pred_fallthru
    _
  // Predicated region
  $region14: #{tpu_custom_call.1} parent=0 // pred_check
    _
  $region15: #{tpu_custom_call.1} parent=0 // pred_check_branch
    %95 = sbr.rel (0) target = $region17
  $region16: #{tpu_custom_call.1} parent=0 // pred_region
    _
  $region17: #{tpu_custom_call.1} parent=0 // pred_fallthru
    _

</llo_original>
